<compile_context>
chip_gen: v7x
topology: tpu7x:2x2x1
jax: 0.10.0
libtpu: 0.0.40
codegen_flags: <defaults>
</compile_context>

<pallas_src>
import functools

import jax
import jax.numpy as jnp
from jax.experimental import pallas as pl
from jax.experimental.pallas import tpu as pltpu


def _round_up(x, m):
    return (x + m - 1) // m * m


def _cdiv(a, b):
    return (a + b - 1) // b


# ---------------------------------------------------------------------------
# Kernels
# ---------------------------------------------------------------------------
def _encoder_kernel_eval(x_ref, w_ref, b_ref, o_ref):
    # Dropout(p=0.5) in eval mode == identity.
    out_f = o_ref.shape[1]
    y = jnp.dot(x_ref[...], w_ref[...], preferred_element_type=jnp.float32)
    y = jnp.maximum(y + b_ref[...], 0.0)           # bias + ReLU in f32
    o_ref[...] = y[:, :out_f].astype(o_ref.dtype)  # store only real columns


def _hash_u32(h):
    # 32-bit integer finalizer (murmur3-style); pure VPU int ops.
    h = h ^ (h >> 16)
    h = h * jnp.uint32(0x7FEB352D)
    h = h ^ (h >> 15)
    h = h * jnp.uint32(0x846CA68B)
    h = h ^ (h >> 16)
    return h


def _encoder_kernel_train(seed_ref, x_ref, w_ref, b_ref, o_ref):
    # Training-mode dropout (p=0.5) from a counter-based hash of
    # (seed, global_row, col): tiling-invariant, no stream aliasing across
    # tiles, and lowers on both Mosaic and the CPU interpreter.
    # TODO(synk): matches PyTorch dropout *semantics*, not its exact RNG stream.
    out_f = o_ref.shape[1]
    tb, fin = x_ref.shape
    i = pl.program_id(0)
    seed = seed_ref[0]

    row = jax.lax.broadcasted_iota(jnp.int32, (tb, fin), 0) + i * tb
    col = jax.lax.broadcasted_iota(jnp.int32, (tb, fin), 1)
    h = (row.astype(jnp.uint32) * jnp.uint32(0x9E3779B1)
         + col.astype(jnp.uint32) * jnp.uint32(0x85EBCA77)
         + seed.astype(jnp.uint32) * jnp.uint32(0xC2B2AE35))
    h = _hash_u32(h)
    keep = (h >> 31) == jnp.uint32(0)              # p_keep = 0.5 (top bit)

    x = x_ref[...]                                  # mask/select kept in f32 (v5e-friendly)
    x = jnp.where(keep, x, jnp.zeros_like(x))
    # The 1/(1-p) = 2 scale is folded into w_ref by prepare_params(training=True).
    y = jnp.dot(x, w_ref[...], preferred_element_type=jnp.float32)
    y = jnp.maximum(y + b_ref[...], 0.0)
    o_ref[...] = y[:, :out_f].astype(o_ref.dtype)


# ---------------------------------------------------------------------------
# Parameter prep (call ONCE, outside the per-step forward)
# ---------------------------------------------------------------------------
def prepare_params(weight, bias, *, training=False):
    """weight: (out_features, in_features) PyTorch nn.Linear layout.
    Returns (wt_pad, b_pad):
      wt_pad: (in_features, fout_pad) transposed, lane-padded to 128,
              pre-scaled by 2 when training (dropout 1/(1-p)).
      b_pad:  (1, fout_pad) float32.
    The fout_pad lanes exist only for the in-kernel MXU tile; the kernel
    stores only the first out_features columns to HBM.
    """
    out_f, in_f = weight.shape
    fout_pad = _round_up(out_f, 128)
    wt = weight.T
    if training:
        wt = wt * 2.0
    wt = jnp.pad(wt, ((0, 0), (0, fout_pad - out_f))).astype(jnp.float32)
    b_pad = jnp.pad(bias, (0, fout_pad - out_f)).reshape(1, fout_pad).astype(jnp.float32)
    return wt, b_pad


# ---------------------------------------------------------------------------
# Forward
# ---------------------------------------------------------------------------
def s_encoder_forward(x, wt_pad, b_pad, *, out_features, n_time_in,
                      training=False, seed=0, out_dtype=None,
                      min_pallas_batch=1024, force_pallas=False):
    """Forward of _sEncoder.

    x:       (B, in_features)
    wt_pad:  (in_features, fout_pad)   from prepare_params
    b_pad:   (1, fout_pad)
    returns  (B, n_time_in, out_features)
    """
    B, fin = x.shape
    fin_w, fout_pad = wt_pad.shape
    assert fin == fin_w, "weight/input feature mismatch"
    assert x.dtype == wt_pad.dtype, "x / weight dtype mismatch (prepare_params)"
    out_dtype = out_dtype or x.dtype

    # --- tiny-batch fallback: custom-call + DMA overhead dwarfs the work ---
    if B < min_pallas_batch and not force_pallas:
        xx = x
        if training:
            keep = jax.random.bernoulli(jax.random.PRNGKey(seed), 0.5, x.shape)
            xx = jnp.where(keep, x, jnp.zeros_like(x))   # 2x scale already in wt_pad
        y = jnp.maximum(xx @ wt_pad[:, :out_features] + b_pad[0, :out_features], 0.0)
        y = y.astype(out_dtype)
        return jnp.broadcast_to(y[:, None, :], (B, n_time_in, out_features))

    x_bytes = jnp.dtype(x.dtype).itemsize
    w_bytes = jnp.dtype(wt_pad.dtype).itemsize
    o_bytes = jnp.dtype(out_dtype).itemsize

    # --- batch tiling: as large as the VMEM budget allows, multiple of 8,
    #     and >= 2 grid steps for big batches (v7x megacore) -----------------
    budget = 24 << 20
    fixed = 2 * fin * fout_pad * w_bytes + 2 * fout_pad * 4      # double-buffered w/b
    if B <= 8:
        tile_b = B
    else:
        tile_b = min(_round_up(B, 8), 4096)
        if B >= 16:
            tile_b = min(tile_b, _round_up(_cdiv(B, 2), 8))      # >= 2 steps
        while tile_b > 8 and fixed + 2 * tile_b * (fin * x_bytes + out_features * o_bytes) > budget:
            tile_b = _round_up(tile_b // 2, 8)
    grid = (_cdiv(B, tile_b),)

    need = (fixed
            + 2 * tile_b * fin * x_bytes                          # double-buffered x
            + 2 * tile_b * out_features * o_bytes)                # double-buffered out
    vmem_limit = int(min(64 << 20, max(need + (8 << 20), 32 << 20)))

    compiler_params = pltpu.CompilerParams(
        dimension_semantics=("parallel",),
        vmem_limit_bytes=vmem_limit,
    )
    cost = pl.CostEstimate(
        flops=2 * B * fin * out_features,
        transcendentals=0,
        bytes_accessed=(B * fin * x_bytes + fin * fout_pad * w_bytes
                        + fout_pad * 4 + B * out_features * o_bytes),
    )
    out_shape = jax.ShapeDtypeStruct((B, out_features), out_dtype)

    if not training:
        y = pl.pallas_call(
            _encoder_kernel_eval,
            out_shape=out_shape,
            grid=grid,
            in_specs=[
                pl.BlockSpec((tile_b, fin), lambda i: (i, 0)),
                pl.BlockSpec((fin, fout_pad), lambda i: (0, 0)),
                pl.BlockSpec((1, fout_pad), lambda i: (0, 0)),
            ],
            out_specs=pl.BlockSpec((tile_b, out_features), lambda i: (i, 0)),
            compiler_params=compiler_params,
            cost_estimate=cost,
        )(x, wt_pad, b_pad)
    else:
        seed_arr = jnp.asarray([seed], dtype=jnp.int32)
        grid_spec = pltpu.PrefetchScalarGridSpec(
            num_scalar_prefetch=1,
            grid=grid,
            in_specs=[
                pl.BlockSpec((tile_b, fin), lambda i, s: (i, 0)),
                pl.BlockSpec((fin, fout_pad), lambda i, s: (0, 0)),
                pl.BlockSpec((1, fout_pad), lambda i, s: (0, 0)),
            ],
            out_specs=pl.BlockSpec((tile_b, out_features), lambda i, s: (i, 0)),
        )
        y = pl.pallas_call(
            _encoder_kernel_train,
            out_shape=out_shape,
            grid_spec=grid_spec,
            compiler_params=compiler_params,
            cost_estimate=cost,
        )(seed_arr, x, wt_pad, b_pad)

    # RepeatVector: pure virtual broadcast (zero FLOPs, fuses into consumer).
    return jnp.broadcast_to(y[:, None, :], (B, n_time_in, out_features))


# ---------------------------------------------------------------------------
# Main
# ---------------------------------------------------------------------------
if __name__ == "__main__":
    key = jax.random.PRNGKey(0)
    kx, kw, kb = jax.random.split(key, 3)

    B, IN_F, OUT_F, N_TIME_IN = 8, 4, 20, 24

    x = jax.random.normal(kx, (B, IN_F), dtype=jnp.float32)

    # nn.Linear default init: U(-1/sqrt(in_features), 1/sqrt(in_features)).
    bound = 1.0 / jnp.sqrt(jnp.float32(IN_F))
    weight = jax.random.uniform(kw, (OUT_F, IN_F), dtype=jnp.float32,
                                minval=-bound, maxval=bound)
    bias = jax.random.uniform(kb, (OUT_F,), dtype=jnp.float32,
                              minval=-bound, maxval=bound)

    # One-time parameter prep (transpose + lane-pad); hoisted out of the step.
    wt_eval, b_pad = prepare_params(weight, bias, training=False)

    fwd = functools.partial(s_encoder_forward, out_features=OUT_F,
                            n_time_in=N_TIME_IN)

    # Pallas path (force_pallas so the kernel actually runs at this tiny B).
    out = fwd(x, wt_eval, b_pad, training=False, force_pallas=True)
    out = jax.block_until_ready(out)

    # Pure-JAX reference (eval mode: dropout = identity; then repeat).
    ref2 = jnp.maximum(x @ weight.T + bias[None, :], 0.0)
    ref = jnp.broadcast_to(ref2[:, None, :], (B, N_TIME_IN, OUT_F))

    assert out.shape == (B, N_TIME_IN, OUT_F)
    assert jnp.allclose(out, ref, atol=1e-5, rtol=1e-5), "mismatch vs reference"

    # Small-batch fallback path (plain jnp) must agree as well.
    out_fb = jax.block_until_ready(fwd(x, wt_eval, b_pad, training=False))
    assert jnp.allclose(out_fb, ref, atol=1e-5, rtol=1e-5), "fallback mismatch"

    # Training path: hash-based dropout (semantics-level checks only;
    # not bit-exact vs PyTorch's RNG stream).
    wt_train, b_pad_t = prepare_params(weight, bias, training=True)
    out_tr = fwd(x, wt_train, b_pad_t, training=True, seed=123, force_pallas=True)
    out_tr = jax.block_until_ready(out_tr)
    assert out_tr.shape == (B, N_TIME_IN, OUT_F)
    assert bool(jnp.all(jnp.isfinite(out_tr)))
    assert bool(jnp.all(out_tr >= 0.0))   # ReLU output is non-negative

    print("KERNEL_OK")
</pallas_src>

<mosaic_0001>
module attributes {stable_mosaic.version = 11 : i64} {
  func.func @_encoder_kernel_eval(%arg0: i32, %arg1: memref<8x4xf32, #tpu.memory_space<vmem>>, %arg2: memref<4x128xf32, #tpu.memory_space<vmem>>, %arg3: memref<1x128xf32, #tpu.memory_space<vmem>>, %arg4: memref<8x20xf32, #tpu.memory_space<vmem>>) attributes {dimension_semantics = [#tpu.dimension_semantics<parallel>], iteration_bounds = array<i64: 1>, scalar_prefetch = 0 : i64, scratch_operands = 0 : i64, tpu.core_type = #tpu.core_type<tc>, window_params = [{transform_indices = @transform_0, window_bounds = array<i64: 8, 4>}, {pipeline_mode = #tpu.pipeline_mode<synchronous>, transform_indices = @transform_1, window_bounds = array<i64: 4, 128>}, {pipeline_mode = #tpu.pipeline_mode<synchronous>, transform_indices = @transform_2, window_bounds = array<i64: 1, 128>}, {transform_indices = @transform_3, window_bounds = array<i64: 8, 20>}]} {
    %c0 = arith.constant 0 : index
    %c0_0 = arith.constant 0 : index
    %0 = vector.load %arg1[%c0, %c0_0] : memref<8x4xf32, #tpu.memory_space<vmem>>, vector<8x4xf32>
    %c0_1 = arith.constant 0 : index
    %c0_2 = arith.constant 0 : index
    %1 = vector.load %arg2[%c0_1, %c0_2] : memref<4x128xf32, #tpu.memory_space<vmem>>, vector<4x128xf32>
    %cst = arith.constant dense<0.000000e+00> : vector<8x128xf32>
    %2 = tpu.matmul %0, %1, %cst {dimension_numbers = #tpu.dot_dimension_numbers<[1], [0], [0], [1], [0, 0, 1, 1], [], []>} : vector<8x4xf32>, vector<4x128xf32>, vector<8x128xf32> -> vector<8x128xf32>
    %c0_3 = arith.constant 0 : index
    %c0_4 = arith.constant 0 : index
    %3 = vector.load %arg3[%c0_3, %c0_4] : memref<1x128xf32, #tpu.memory_space<vmem>>, vector<1x128xf32>
    %4 = vector.broadcast %3 : vector<1x128xf32> to vector<8x128xf32>
    %5 = arith.addf %2, %4 : vector<8x128xf32>
    %cst_5 = arith.constant 0.000000e+00 : f32
    %6 = vector.broadcast %cst_5 : f32 to vector<8x128xf32>
    %7 = arith.maximumf %5, %6 : vector<8x128xf32>
    %8 = vector.extract_strided_slice %7 {offsets = [0, 0], sizes = [8, 20], strides = [1, 1]} : vector<8x128xf32> to vector<8x20xf32>
    %c0_6 = arith.constant 0 : index
    %c0_7 = arith.constant 0 : index
    %9 = vector.load %arg4[%c0_6, %c0_7] : memref<8x20xf32, #tpu.memory_space<vmem>>, vector<8x20xf32>
    tpu.vector_store %arg4[%c0_6, %c0_7], %8 {strides = array<i32>} : memref<8x20xf32, #tpu.memory_space<vmem>>, vector<8x20xf32>,
    return
  }
  func.func @transform_0(%arg0: i32) -> (i32, i32) {
    %c0_i32 = arith.constant 0 : i32
    %c0_i32_0 = arith.constant 0 : i32
    return %arg0, %c0_i32 : i32, i32
  }
  func.func @transform_1(%arg0: i32) -> (i32, i32) {
    %c0_i32 = arith.constant 0 : i32
    %c0_i32_0 = arith.constant 0 : i32
    %c0_i32_1 = arith.constant 0 : i32
    return %c0_i32, %c0_i32_0 : i32, i32
  }
  func.func @transform_2(%arg0: i32) -> (i32, i32) {
    %c0_i32 = arith.constant 0 : i32
    %c0_i32_0 = arith.constant 0 : i32
    %c0_i32_1 = arith.constant 0 : i32
    return %c0_i32, %c0_i32_0 : i32, i32
  }
  func.func @transform_3(%arg0: i32) -> (i32, i32) {
    %c0_i32 = arith.constant 0 : i32
    %c0_i32_0 = arith.constant 0 : i32
    return %arg0, %c0_i32 : i32, i32
  }
}

</mosaic_0001>

<llo_original>
// kernel: tpu_custom_call.1
$region0: #{tpu_custom_call.1}
  #allocation0 [shape = 'u32[]', space=smem, size = 0x4, offset = 0x4, fixed_abs, tag = 'smem constant byte address 0x4 - core index']
  #allocation1 [shape = 'u32[144,128]{1,0:T(1,128)}', space=vmem, size = 0x12000, scoped, tag = 'internal scratch']
  %s0 = inlined_call_operand.vmem [shape: f32[8,4], index: 0, kind: input, shape index: {}]
  %s1 = inlined_call_operand.vmem [shape: f32[4,128], index: 1, kind: input, shape index: {}]
  %s2 = inlined_call_operand.vmem [shape: f32[1,128], index: 2, kind: input, shape index: {}]
  %s3 = inlined_call_operand.hbm [shape: f32[8,20], index: 3, kind: output, shape index: {}]
  %s4 = sld [smem:[#allocation0]]
  $region22: #{tpu_custom_call.1} parent=0
    _
  %s6 = ssub.s32 1, %s4
  %s7 = scalar_select 0, %s6, %s4
  $region1: #{tpu_custom_call.1} parent=0
    #allocation2 [shape = 'u8[4096]{0}', space=vmem, size = 0x1000, scoped, tag = 'output window, operand 0, single buffered']
    #allocation3 [shape = 's32[1]{0}', space=sflag, size = 0x4, scoped, tag = 'scoped memory for tpu_custom_call.1']
    %8 = vsyncpa [#allocation3], 0
    // Predicated region
    $region2: #{tpu_custom_call.1} parent=1 // pred_check
      _
    $region3: #{tpu_custom_call.1} parent=1 // pred_check_branch
      %10 = sbr.rel (0) target = $region5
    $region4: #{tpu_custom_call.1} parent=1 // pred_region
      _
    $region5: #{tpu_custom_call.1} parent=1 // pred_fallthru
      _
    // Predicated region
    $region6: #{tpu_custom_call.1} parent=1 // pred_check
      _
    $region7: #{tpu_custom_call.1} parent=1 // pred_check_branch
      %12 = sbr.rel (0) target = $region9
    $region8: #{tpu_custom_call.1} parent=1 // pred_region
      _
    $region9: #{tpu_custom_call.1} parent=1 // pred_fallthru
      _
    // Predicated region
    $region10: #{tpu_custom_call.1} parent=1 // pred_check
      _
    $region11: #{tpu_custom_call.1} parent=1 // pred_check_branch
      %14 = sbr.rel (0) target = $region13
    $region12: #{tpu_custom_call.1} parent=1 // pred_region
      _
    $region13: #{tpu_custom_call.1} parent=1 // pred_fallthru
      _
    %v15 = vld [vmem:[%s0] sm:$0xff]
    %v16 = vld [vmem:[%s1] sm:$0xf]
    %v17 = vld [vmem:[%s2] sm:$0x1]
    %v19 = vlaneseq
    %v20 = vshrl.u32 %v19, 7
    %v21 = vsub.s32 0, %v20
    %v22 = vrot.slane %v17, %v21
    %vm24 = vcmask 31744
    %v26 = vsel %vm24, %v15, 0
    %vm28 = vcmask 1043456
    %v30 = vsel %vm28, %v16, 0
    %32 = vmatprep.subr.mxu0 0.0
    %33 = vmatpush1.msra.mxu0 %v30
    %34 = vmatprep.subr.mxu0 0.0
    %35 = vmatpush1.msra.mxu0 0.0
    %36 = vmatprep.subr.mxu0 0.0
    %37 = vmatpush1.msra.mxu0 0.0
    %38 = vmatprep.subr.mxu0 0.0
    %39 = vmatpush1.msra.mxu0 0.0
    %40 = vmatprep.subr.mxu0 0.0
    %41 = vmatpush1.msra.mxu0 0.0
    %42 = vmatprep.subr.mxu0 0.0
    %43 = vmatpush1.msra.mxu0 0.0
    %44 = vmatprep.subr.mxu0 0.0
    %45 = vmatpush1.msra.mxu0 0.0
    %46 = vmatprep.subr.mxu0 0.0
    %47 = vmatpush1.msra.mxu0 0.0
    %48 = vmatprep.subr.mxu0 0.0
    %49 = vmatpush1.msra.mxu0 0.0
    %50 = vmatprep.subr.mxu0 0.0
    %51 = vmatpush1.msra.mxu0 0.0
    %52 = vmatprep.subr.mxu0 0.0
    %53 = vmatpush1.msra.mxu0 0.0
    %54 = vmatprep.subr.mxu0 0.0
    %55 = vmatpush1.msra.mxu0 0.0
    %56 = vmatprep.subr.mxu0 0.0
    %57 = vmatpush1.msra.mxu0 0.0
    %58 = vmatprep.subr.mxu0 0.0
    %59 = vmatpush1.msra.mxu0 0.0
    %60 = vmatprep.subr.mxu0 0.0
    %61 = vmatpush1.msra.mxu0 0.0
    %62 = vmatprep.subr.mxu0 0.0
    %63 = vmatpush1.msra.mxu0 0.0
    %64 = vmatprep.subr.mxu0 0.0
    %65 = vmatpush1.msra.mxu0 0.0
    %66 = vmatprep.subr.mxu0 0.0
    %67 = vmatpush1.msra.mxu0 0.0
    %68 = vmatprep.subr.mxu0 0.0
    %69 = vmatpush1.msra.mxu0 0.0
    %70 = vmatprep.subr.mxu0 0.0
    %71 = vmatpush1.msra.mxu0 0.0
    %72 = vmatprep.subr.mxu0 0.0
    %73 = vmatpush1.msra.mxu0 0.0
    %74 = vmatprep.subr.mxu0 0.0
    %75 = vmatpush1.msra.mxu0 0.0
    %76 = vmatprep.subr.mxu0 0.0
    %77 = vmatpush1.msra.mxu0 0.0
    %78 = vmatprep.subr.mxu0 0.0
    %79 = vmatpush1.msra.mxu0 0.0
    %80 = vmatprep.subr.mxu0 0.0
    %81 = vmatpush1.msra.mxu0 0.0
    %82 = vmatprep.subr.mxu0 0.0
    %83 = vmatpush1.msra.mxu0 0.0
    %84 = vmatprep.subr.mxu0 0.0
    %85 = vmatpush1.msra.mxu0 0.0
    %86 = vmatprep.subr.mxu0 0.0
    %87 = vmatpush1.msra.mxu0 0.0
    %88 = vmatprep.subr.mxu0 0.0
    %89 = vmatpush1.msra.mxu0 0.0
    %90 = vmatprep.subr.mxu0 0.0
    %91 = vmatpush1.msra.mxu0 0.0
    %92 = vmatprep.subr.mxu0 0.0
    %93 = vmatpush1.msra.mxu0 0.0
    %94 = vmatprep.subr.mxu0 0.0
    %95 = vmatpush1.msra.mxu0 0.0
    %96 = vmatprep.mubr.f32.mxu0 0.0
    %97 = vmatmul.mubr.f32.gmra.mrb[0].mxu0 %v26
    %v98 = vpop.f32.mrb[0].mxu0
    %v99 = vadd.f32 %v22, %v98
    %v100 = vpop.f32.mrb[0].mxu0
    %101 = vdwg.mxu0
    %v102 = vmax.f32 %v99, 0.0
    %vm103 = vcmask 162816
    %104 = vst.msk [vmem:[#allocation2] sm:$0xff] %vm103, %v102
    // Predicated region
    $region14: #{tpu_custom_call.1} parent=1 // pred_check
      _
    $region15: #{tpu_custom_call.1} parent=1 // pred_check_branch
      %106 = sbr.rel (0) target = $region17
    $region16: #{tpu_custom_call.1} parent=1 // pred_region
      %s108 = ssub.s32 128, 128
      %109 = vsyncadd [#allocation3], %s108
      %s111 = sshll.u32 [#allocation2], 4
      %s112 = int_to_ptr.vmem [resolvable:$true] %s111
      %114 = dma.vmem_to_hbm [thread:$0]  %s112, 128, %s3, [#allocation3]
    $region17: #{tpu_custom_call.1} parent=1 // pred_fallthru
      _
    // Predicated region
    $region18: #{tpu_custom_call.1} parent=1 // pred_check
      _
    $region19: #{tpu_custom_call.1} parent=1 // pred_check_branch
      %116 = sbr.rel (0) target = $region21
    $region20: #{tpu_custom_call.1} parent=1 // pred_region
      %117 = dma.done [#allocation3], 128
    $region21: #{tpu_custom_call.1} parent=1 // pred_fallthru
      _
    %118 = vsyncpa [#allocation3], 1

</llo_original>
